<compile_context>
chip_gen: v7x
topology: tpu7x:2x2x1
jax: 0.10.0
libtpu: 0.0.40
codegen_flags: <defaults>
</compile_context>

<pallas_src>
import functools

import numpy as np
import jax
import jax.numpy as jnp
from jax import lax
from jax.experimental import pallas as pl
from jax.experimental.pallas import tpu as pltpu


# ---------------------------------------------------------------------------
# Parameter setup (deterministic, mirrors the PyTorch __init__ exactly).
# Used only for the host-side reference / sanity asserts.
# ---------------------------------------------------------------------------
def create_gaussian_np(size, sigma1):
    zs = np.arange((-size) // 2 + 1, size // 2 + 1, dtype=np.float64)
    func1 = np.exp(-zs ** 2 / (2.0 * sigma1 ** 2)) / np.sqrt(2.0 * np.pi * sigma1 ** 2)
    return np.outer(func1, func1)


def create_penalty_mask_np(k_size, penalty_scale):
    center_size = k_size // 2 + k_size % 2
    mask = create_gaussian_np(size=k_size, sigma1=k_size)
    mask = 1.0 - mask / np.max(mask)
    margin = (k_size - center_size) // 2 - 1
    mask[margin:-margin, margin:-margin] = 0.0
    return penalty_scale * mask


# ---------------------------------------------------------------------------
# Static config (mirrors Constraints class attributes)
# ---------------------------------------------------------------------------
K_SIZE = 17
SCALE_FACTOR = 0.5
LAMBDA_SUM2ONE = 0.5
LAMBDA_BOUNDARIES = 0.5
LAMBDA_CENTRALIZED = 0.0
LAMBDA_SPARSE = 0.0
PENALTY_SCALE = 30.0

_WANTED_CENTER = float(K_SIZE // 2 + 0.5 * (int(1.0 / SCALE_FACTOR) - K_SIZE % 2))

# Penalty-mask geometry (create_penalty_mask):
#   zs       = -8 .. 8                        (K=17)
#   ratio    = gauss / max(gauss) = exp(-(zr^2 + zc^2) / (2*sigma^2)), sigma=K
#   mask     = 1 - ratio, zeroed on the center box [margin : K-margin)
_CENTER_SIZE = K_SIZE // 2 + K_SIZE % 2
_MARGIN = (K_SIZE - _CENTER_SIZE) // 2 - 1                     # == 3
_Z_START = float((-K_SIZE) // 2 + 1)                           # == -8.0
_INV_TWO_SIGMA_SQ = 1.0 / (2.0 * float(K_SIZE) * float(K_SIZE))
# lambda_b * mean(|k*mask|) == (lambda_b * penalty_scale / K^2) * sum(|k|*mask_raw)
_BOUNDARIES_SCALE = LAMBDA_BOUNDARIES * PENALTY_SCALE / float(K_SIZE * K_SIZE)

# |k * mask| == |k| * mask requires a non-negative mask; guard against a
# future mask change silently breaking the folding.
assert create_penalty_mask_np(K_SIZE, PENALTY_SCALE).min() >= 0.0, (
    "penalty mask must be non-negative for the |k*mask| == |k|*mask folding")


# ---------------------------------------------------------------------------
# Pallas kernel
# ---------------------------------------------------------------------------
def _constraints_kernel(k_ref, out_ref, *, k_size, z_start, inv_two_sigma_sq,
                        margin, boundaries_scale, lam_sum2one, wanted_center,
                        lam_centralized, lam_sparse):
    # Native-dtype input; cast in-kernel (no-op for f32, free VPU cast for bf16).
    k = k_ref[...].astype(jnp.float32)          # (K, K) in VMEM
    absk = jnp.abs(k)
    k_sum = jnp.sum(k)

    # --- Rebuild the constant penalty mask in-kernel (no second input / DMA).
    row_i = lax.broadcasted_iota(jnp.int32, (k_size, k_size), 0)
    col_i = lax.broadcasted_iota(jnp.int32, (k_size, k_size), 1)
    z_r = row_i.astype(jnp.float32) + z_start
    z_c = col_i.astype(jnp.float32) + z_start
    ratio = jnp.exp(-(z_r * z_r + z_c * z_c) * inv_two_sigma_sq)   # gauss/max(gauss)
    hi = k_size - 1 - margin
    in_center = ((row_i >= margin) & (row_i <= hi) &
                 (col_i >= margin) & (col_i <= hi))
    mask = jnp.where(in_center, jnp.float32(0.0), jnp.float32(1.0) - ratio)

    # SumOfWeightsLoss: |1 - sum(k)|                (lambda applied here)
    # BoundariesLoss:   mean(|k * penalty_mask|)    (lambda, scale, 1/K^2 folded
    #                                                into boundaries_scale)
    total = (lam_sum2one * jnp.abs(1.0 - k_sum)
             + boundaries_scale * jnp.sum(absk * mask))

    # --- zero-lambda terms are removed at trace time (static Python branch).
    # XLA cannot DCE `0.0 * x` (0*NaN != 0), and the centralized term would
    # propagate NaN whenever sum(k) ~ 0.
    if lam_centralized != 0.0:
        com_r = jnp.sum(k * row_i.astype(jnp.float32)) / k_sum
        com_c = jnp.sum(k * col_i.astype(jnp.float32)) / k_sum
        # PyTorch MSELoss broadcasts (2,1) vs (2,) -> (2,2); components average out.
        loss_centralized = 0.5 * ((com_r - wanted_center) ** 2 +
                                  (com_c - wanted_center) ** 2)
        total = total + lam_centralized * loss_centralized

    if lam_sparse != 0.0:
        n_elems = float(k_size * k_size)
        # |x|^0.2 as exp(0.2*log|x|), defined as 0 at x == 0.
        pow_k = jnp.where(
            absk > 0.0,
            jnp.exp(0.2 * jnp.log(jnp.maximum(absk, jnp.float32(1e-38)))),
            jnp.float32(0.0),
        )
        total = total + lam_sparse * (jnp.sum(pow_k) / n_elems)

    out_ref[0, 0] = total


# ---------------------------------------------------------------------------
# Wrapper (the "Constraints.forward" equivalent).  Returns a (1, 1) f32 array
# (consume as-is / squeeze in the caller's jit) to avoid an extra tiny XLA op
# around the microsecond-scale custom call.
# ---------------------------------------------------------------------------
@jax.jit
def constraints_forward(g_input, g_pred, curr_k):
    # g_input / g_pred accepted for signature parity but (exactly like the
    # reference forward) do not contribute to the returned loss.
    del g_input, g_pred

    kernel_fn = functools.partial(
        _constraints_kernel,
        k_size=K_SIZE,
        z_start=_Z_START,
        inv_two_sigma_sq=_INV_TWO_SIGMA_SQ,
        margin=_MARGIN,
        boundaries_scale=_BOUNDARIES_SCALE,
        lam_sum2one=LAMBDA_SUM2ONE,
        wanted_center=_WANTED_CENTER,
        lam_centralized=LAMBDA_CENTRALIZED,
        lam_sparse=LAMBDA_SPARSE,
    )
    n = K_SIZE * K_SIZE
    cost = pl.CostEstimate(
        flops=12 * n,                 # mask build + 2 reductions + combine
        transcendentals=n,            # one exp per element (mask build)
        bytes_accessed=n * curr_k.dtype.itemsize + 4,
    )
    out = pl.pallas_call(
        kernel_fn,
        out_shape=jax.ShapeDtypeStruct((1, 1), jnp.float32),
        in_specs=[pl.BlockSpec(memory_space=pltpu.MemorySpace.VMEM)],
        out_specs=pl.BlockSpec(memory_space=pltpu.MemorySpace.SMEM),
        cost_estimate=cost,
    )(curr_k)
    return out   # (1, 1) f32


# ---------------------------------------------------------------------------
# Pure numpy reference (sanity check)
# ---------------------------------------------------------------------------
def _reference(curr_k):
    k = np.asarray(curr_k, np.float64)
    mask = np.asarray(create_penalty_mask_np(K_SIZE, PENALTY_SCALE), np.float64)
    k_sum = k.sum()
    loss_sum2one = abs(1.0 - k_sum)
    loss_boundaries = np.abs(k * mask).mean()
    idx = np.arange(K_SIZE, dtype=np.float64)
    com_r = (k.sum(axis=1) @ idx) / k_sum
    com_c = (k.sum(axis=0) @ idx) / k_sum
    loss_centralized = 0.5 * ((com_r - _WANTED_CENTER) ** 2 +
                              (com_c - _WANTED_CENTER) ** 2)
    loss_sparse = (np.abs(k) ** 0.2).mean()
    return (LAMBDA_SUM2ONE * loss_sum2one + LAMBDA_BOUNDARIES * loss_boundaries +
            LAMBDA_CENTRALIZED * loss_centralized + LAMBDA_SPARSE * loss_sparse)


if __name__ == "__main__":
    key = jax.random.PRNGKey(0)
    k1, k2, k3 = jax.random.split(key, 3)
    # Shapes implied by the module: g_input NCHW, g_pred its 0.5x downscale,
    # curr_k the (17, 17) kernel estimate.
    g_input = jax.random.normal(k1, (2, 3, 16, 16), dtype=jnp.float32)
    g_pred = jax.random.normal(k2, (2, 3, 8, 8), dtype=jnp.float32)
    curr_k = jax.nn.softmax(
        jax.random.normal(k3, (K_SIZE * K_SIZE,), dtype=jnp.float32)
    ).reshape(K_SIZE, K_SIZE)

    loss = constraints_forward(g_input, g_pred, curr_k)
    loss = jax.block_until_ready(loss)

    ref = _reference(np.asarray(curr_k))
    np.testing.assert_allclose(np.asarray(loss)[0, 0], ref, rtol=1e-4, atol=1e-5)
    print("KERNEL_OK")
</pallas_src>

<mosaic_0001>
module attributes {stable_mosaic.version = 11 : i64} {
  func.func @_constraints_kernel(%arg0: memref<17x17xf32, #tpu.memory_space<vmem>>, %arg1: memref<1x1xf32, #tpu.memory_space<smem>>) attributes {dimension_semantics = [], scalar_prefetch = 0 : i64, scratch_operands = 0 : i64, tpu.core_type = #tpu.core_type<tc>} {
    %c0 = arith.constant 0 : index
    %c0_0 = arith.constant 0 : index
    %0 = vector.load %arg0[%c0, %c0_0] : memref<17x17xf32, #tpu.memory_space<vmem>>, vector<17x17xf32>
    %1 = math.absf %0 : vector<17x17xf32>
    %2 = vector.shape_cast %0 : vector<17x17xf32> to vector<1x17x17xf32>
    %cst = arith.constant dense<0.000000e+00> : vector<1xf32>
    %3 = vector.multi_reduction <add>, %2, %cst [1, 2] : vector<1x17x17xf32> to vector<1xf32>
    %4 = vector.shape_cast %3 : vector<1xf32> to vector<1x1x1xf32>
    %5 = vector.extract %4[0, 0, 0] : f32 from vector<1x1x1xf32>
    %6 = tpu.iota {dimensions = array<i32: 0>} : vector<17x17xi32>
    %7 = tpu.iota {dimensions = array<i32: 1>} : vector<17x17xi32>
    %8 = arith.sitofp %6 : vector<17x17xi32> to vector<17x17xf32>
    %cst_1 = arith.constant -8.000000e+00 : f32
    %9 = vector.broadcast %cst_1 : f32 to vector<17x17xf32>
    %10 = arith.addf %8, %9 : vector<17x17xf32>
    %11 = arith.sitofp %7 : vector<17x17xi32> to vector<17x17xf32>
    %cst_2 = arith.constant -8.000000e+00 : f32
    %12 = vector.broadcast %cst_2 : f32 to vector<17x17xf32>
    %13 = arith.addf %11, %12 : vector<17x17xf32>
    %14 = arith.mulf %10, %10 : vector<17x17xf32>
    %15 = arith.mulf %13, %13 : vector<17x17xf32>
    %16 = arith.addf %14, %15 : vector<17x17xf32>
    %cst_3 = arith.constant 0.000000e+00 : f32
    %17 = vector.broadcast %cst_3 : f32 to vector<17x17xf32>
    %18 = arith.subf %17, %16 : vector<17x17xf32>
    %cst_4 = arith.constant 0.00173010386 : f32
    %19 = vector.broadcast %cst_4 : f32 to vector<17x17xf32>
    %20 = arith.mulf %18, %19 : vector<17x17xf32>
    %21 = math.exp %20 : vector<17x17xf32>
    %c3_i32 = arith.constant 3 : i32
    %22 = vector.broadcast %c3_i32 : i32 to vector<17x17xi32>
    %23 = arith.cmpi sge, %6, %22 : vector<17x17xi32>
    %c13_i32 = arith.constant 13 : i32
    %24 = vector.broadcast %c13_i32 : i32 to vector<17x17xi32>
    %25 = arith.cmpi sle, %6, %24 : vector<17x17xi32>
    %26 = arith.andi %23, %25 : vector<17x17xi1>
    %c3_i32_5 = arith.constant 3 : i32
    %27 = vector.broadcast %c3_i32_5 : i32 to vector<17x17xi32>
    %28 = arith.cmpi sge, %7, %27 : vector<17x17xi32>
    %29 = arith.andi %26, %28 : vector<17x17xi1>
    %c13_i32_6 = arith.constant 13 : i32
    %30 = vector.broadcast %c13_i32_6 : i32 to vector<17x17xi32>
    %31 = arith.cmpi sle, %7, %30 : vector<17x17xi32>
    %32 = arith.andi %29, %31 : vector<17x17xi1>
    %cst_7 = arith.constant 1.000000e+00 : f32
    %33 = vector.broadcast %cst_7 : f32 to vector<17x17xf32>
    %34 = arith.subf %33, %21 : vector<17x17xf32>
    %cst_8 = arith.constant 0.000000e+00 : f32
    %35 = vector.broadcast %cst_8 : f32 to vector<17x17xf32>
    %36 = arith.select %32, %35, %34 : vector<17x17xi1>, vector<17x17xf32>
    %cst_9 = arith.constant 1.000000e+00 : f32
    %37 = arith.subf %cst_9, %5 : f32
    %38 = math.absf %37 : f32
    %cst_10 = arith.constant 5.000000e-01 : f32
    %39 = arith.mulf %cst_10, %38 : f32
    %40 = arith.mulf %1, %36 : vector<17x17xf32>
    %41 = vector.shape_cast %40 : vector<17x17xf32> to vector<1x17x17xf32>
    %cst_11 = arith.constant dense<0.000000e+00> : vector<1xf32>
    %42 = vector.multi_reduction <add>, %41, %cst_11 [1, 2] : vector<1x17x17xf32> to vector<1xf32>
    %43 = vector.shape_cast %42 : vector<1xf32> to vector<1x1x1xf32>
    %44 = vector.extract %43[0, 0, 0] : f32 from vector<1x1x1xf32>
    %cst_12 = arith.constant 0.0519031137 : f32
    %45 = arith.mulf %cst_12, %44 : f32
    %46 = arith.addf %39, %45 : f32
    %c0_13 = arith.constant 0 : index
    %c0_14 = arith.constant 0 : index
    %47 = memref.load %arg1[%c0_13, %c0_14] : memref<1x1xf32, #tpu.memory_space<smem>>
    memref.store %46, %arg1[%c0_13, %c0_14] : memref<1x1xf32, #tpu.memory_space<smem>>
    return
  }
}

</mosaic_0001>

<llo_original>
// kernel: constraints_forward.1
$region0: #{constraints_forward.1}
  #allocation0 [shape = 'u32[]', space=smem, size = 0x4, offset = 0x4, fixed_abs, tag = 'smem constant byte address 0x4 - core index']
  #allocation1 [shape = 'u32[144,128]{1,0:T(1,128)}', space=vmem, size = 0x12000, scoped, tag = 'internal scratch']
  %s0 = inlined_call_operand.hbm [shape: f32[17,17], index: 0, kind: input, shape index: {}]
  %s1 = inlined_call_operand.hbm [shape: f32[1,1], index: 1, kind: output, shape index: {}]
  %s2 = sld [smem:[#allocation0]]
  $region18: #{constraints_forward.1} parent=0
    _
  %s4 = ssub.s32 1, %s2
  %s5 = scalar_select 0, %s4, %s2
  $region1: #{constraints_forward.1} parent=0
    #allocation2 [shape = 'u8[12288]{0}', space=vmem, size = 0x3000, scoped, tag = 'input window, operand 0, single buffered']
    #allocation3 [shape = 's32[1]{0}', space=sflag, size = 0x4, scoped, tag = 'scoped memory for constraints_forward.1']
    #allocation4 [shape = 's32[1]{0}', space=sflag, size = 0x4, scoped, tag = 'scoped memory for constraints_forward.1']
    #allocation5 [shape = 'u8[512]{0}', space=smem, size = 0x200, scoped, tag = 'output window, operand 0, single buffered']
    %6 = vsyncpa [#allocation3], 0
    %7 = vsyncpa [#allocation4], 0
    // Predicated region
    $region2: #{constraints_forward.1} parent=1 // pred_check
      _
    $region3: #{constraints_forward.1} parent=1 // pred_check_branch
      %9 = sbr.rel (0) target = $region5
    $region4: #{constraints_forward.1} parent=1 // pred_region
      %s11 = ssub.s32 384, 384
      %12 = vsyncadd [#allocation3], %s11
      %s13 = sshll.u32 [#allocation2], 4
      %s14 = int_to_ptr.vmem [resolvable:$true] %s13
      %19 = dma.hbm_to_vmem [thread:$0]  %s0, 384, %s14, [#allocation3], 128, 128, 8
    $region5: #{constraints_forward.1} parent=1 // pred_fallthru
      _
    // Predicated region
    $region6: #{constraints_forward.1} parent=1 // pred_check
      _
    $region7: #{constraints_forward.1} parent=1 // pred_check_branch
      %21 = sbr.rel (0) target = $region9
    $region8: #{constraints_forward.1} parent=1 // pred_region
      %22 = dma.done [#allocation3], 384
    $region9: #{constraints_forward.1} parent=1 // pred_fallthru
      _
    %v23 = vld [vmem:[#allocation2] sm:$0xff]
    %v24 = vld [vmem:[#allocation2 + $0x8] sm:$0xff]
    %v25 = vld [vmem:[#allocation2 + $0x10] sm:$0x1]
    %v26 = vand.u32 2147483647, %v23
    %v27 = vand.u32 2147483647, %v24
    %v28 = vand.u32 2147483647, %v25
    %vm29 = vcmask 138240
    %v30 = vsel %vm29, %v23, 0.0
    %v31 = vsel %vm29, %v24, 0.0
    %v32 = vadd.f32 %v30, %v31
    %vm33 = vcmask 131072
    %v34 = vsel %vm33, %v25, 0.0
    %v35 = vadd.f32 %v32, %v34
    %36 = vadd.xlane.f32.xlu0 %v35
    %v37 = vpop.xlane.xlu0 %36
    %v38 = vrot.slane %v37, 4
    %v39 = vadd.f32 %v37, %v38
    %v40 = vrot.slane %v39, 2
    %v41 = vadd.f32 %v39, %v40
    %v42 = vrot.slane %v41, 1
    %v43 = vadd.f32 %v41, %v42
    %s44 = vtos %v43
    %v45 = vlaneseq
    %v46 = vshrl.u32 %v45, 7
    %v47 = vadd.s32 %v46, 8
    %v48 = vadd.s32 %v46, 16
    %v49 = vlaneseq
    %v50 = vand.u32 %v49, 127
    %v51 = vcvt.s32.f32 %v46
    %v52 = vcvt.s32.f32 %v47
    %v53 = vcvt.s32.f32 %v48
    %v54 = vadd.f32 %v51, -8.0
    %v55 = vadd.f32 %v52, -8.0
    %v56 = vadd.f32 %v53, -8.0
    %v57 = vcvt.s32.f32 %v50
    %v58 = vadd.f32 %v57, -8.0
    %v59 = vmul.f32 %v54, %v54
    %v60 = vmul.f32 %v55, %v55
    %v61 = vmul.f32 %v56, %v56
    %v62 = vmul.f32 %v58, %v58
    %v63 = vadd.f32 %v59, %v62
    %v64 = vadd.f32 %v60, %v62
    %v65 = vadd.f32 %v61, %v62
    %v66 = vsub.f32 0.0, %v63
    %v67 = vsub.f32 0.0, %v64
    %v68 = vsub.f32 0.0, %v65
    %v69 = vmul.f32 %v66, 0.0017301039
    %v70 = vmul.f32 %v67, 0.0017301039
    %v71 = vmul.f32 %v68, 0.0017301039
    %v72 = vmul.f32 %v69, 1.442695
    %v73 = vpow.pop %v72
    %v74 = vmul.f32 %v70, 1.442695
    %v75 = vpow.pop %v74
    %v76 = vmul.f32 %v71, 1.442695
    %v77 = vpow.pop %v76
    %vm78 = vcmp.ge.s32.totalorder %v46, 3
    %vm79 = vcmp.ge.s32.totalorder %v47, 3
    %vm80 = vcmp.ge.s32.totalorder %v48, 3
    %vm81 = vcmp.le.s32.totalorder %v46, 13
    %vm82 = vcmp.le.s32.totalorder %v47, 13
    %vm83 = vcmp.le.s32.totalorder %v48, 13
    %vm84 = vmand %vm78, %vm81
    %vm85 = vmand %vm79, %vm82
    %vm86 = vmand %vm80, %vm83
    %vm87 = vcmp.ge.s32.totalorder %v50, 3
    %vm88 = vmand %vm84, %vm87
    %vm89 = vmand %vm85, %vm87
    %vm90 = vmand %vm86, %vm87
    %vm91 = vcmp.le.s32.totalorder %v50, 13
    %vm92 = vmand %vm88, %vm91
    %vm93 = vmand %vm89, %vm91
    %vm94 = vmand %vm90, %vm91
    %v95 = vsub.f32 1.0, %v73
    %v96 = vsub.f32 1.0, %v75
    %v97 = vsub.f32 1.0, %v77
    %v98 = vsel %vm92, 0.0, %v95
    %v99 = vsel %vm93, 0.0, %v96
    %v100 = vsel %vm94, 0.0, %v97
    %s101 = ssub.f32 1.0, %s44
    %s102 = sand.u32 2147483647, %s101
    %s103 = smul.f32 %s102, 0.5
    %v104 = vmul.f32 %v26, %v98
    %v105 = vmul.f32 %v27, %v99
    %v106 = vmul.f32 %v28, %v100
    %v107 = vsel %vm29, %v104, 0.0
    %v108 = vsel %vm29, %v105, 0.0
    %v109 = vadd.f32 %v107, %v108
    %v110 = vsel %vm33, %v106, 0.0
    %v111 = vadd.f32 %v109, %v110
    %112 = vadd.xlane.f32.xlu0 %v111
    %v113 = vpop.xlane.xlu0 %112
    %v114 = vrot.slane %v113, 4
    %v115 = vadd.f32 %v113, %v114
    %v116 = vrot.slane %v115, 2
    %v117 = vadd.f32 %v115, %v116
    %v118 = vrot.slane %v117, 1
    %v119 = vadd.f32 %v117, %v118
    %s120 = vtos %v119
    %s121 = smul.f32 %s120, 0.051903114
    %s122 = sadd.f32 %s103, %s121
    %s123 = scalar_lea.smem [#allocation5], 0
    %124 = sst [smem:[%s123]] %s122
    // Predicated region
    $region10: #{constraints_forward.1} parent=1 // pred_check
      _
    $region11: #{constraints_forward.1} parent=1 // pred_check_branch
      %126 = sbr.rel (0) target = $region13
    $region12: #{constraints_forward.1} parent=1 // pred_region
      %s128 = ssub.s32 16, 16
      %129 = vsyncadd [#allocation4], %s128
      %132 = dma.smem_to_hbm [#allocation5], 16, %s1, [#allocation4]
    $region13: #{constraints_forward.1} parent=1 // pred_fallthru
      _
    // Predicated region
    $region14: #{constraints_forward.1} parent=1 // pred_check
      _
    $region15: #{constraints_forward.1} parent=1 // pred_check_branch
      %134 = sbr.rel (0) target = $region17
    $region16: #{constraints_forward.1} parent=1 // pred_region
      %135 = dma.done [#allocation4], 16
    $region17: #{constraints_forward.1} parent=1 // pred_fallthru
      _
    %136 = sfence
    %137 = vsyncpa [#allocation3], 1
    %138 = vsyncpa [#allocation4], 1

</llo_original>
